<compile_context>
chip_gen: v6e
topology: v6e:2x2x1
jax: 0.10.0
libtpu: 0.0.40
codegen_flags: <defaults>
</compile_context>

<pallas_src>
import numpy as np
import jax
import jax.numpy as jnp
from jax.experimental import pallas as pl
from jax.experimental.pallas import tpu as pltpu


# ----------------------------- parameter setup (glue) -----------------------------

def haar_cayley_weight_1d(num_channels: int, dtype=jnp.float32) -> jnp.ndarray:
    """__initialize_weight__ for init='haar', method='cayley', stride=(2,)."""
    p = -np.sqrt(2.0) / (2.0 - np.sqrt(2.0))
    w = np.array([[0.0, p], [0.0, 0.0]], dtype=np.float32)
    return jnp.asarray(np.tile(w[None], (num_channels, 1, 1)), dtype=dtype)


def cayley_kernel_matrix(weight: jnp.ndarray) -> jnp.ndarray:
    """iunets cayley: A = W - W^T ;  Q = (I + A)^{-1} (I - A), batched over channels.

    For 2x2 matrices the skew-symmetric part has a single parameter a = w01 - w10, so the
    Cayley transform has the exact closed form  Q = 1/(1+a^2) [[1-a^2, -2a], [2a, 1-a^2]].
    """
    w = weight.astype(jnp.float32)
    a = w[:, 0, 1] - w[:, 1, 0]
    d = 1.0 + a * a
    q00 = (1.0 - a * a) / d
    q01 = (-2.0 * a) / d
    row0 = jnp.stack([q00, q01], axis=-1)
    row1 = jnp.stack([-q01, q00], axis=-1)
    return jnp.stack([row0, row1], axis=-2)          # (C, 2, 2)


# ----------------------------- Pallas kernel -----------------------------

def _pair_mix_kernel(coef_ref, x_ref, o_ref):
    # coef_ref: (R, 3) resident per-row coefficients; lanes = [a_self, a_next, a_prev]
    # x_ref   : (R, tt) deinterleaved input rows (r = n*2C + 2c + k), lane = output position
    # o_ref   : (R, tt) output rows (r = n*2C + 2g + s), already in natural layout
    x = x_ref[...]
    R = x.shape[0]
    a_self = coef_ref[:, 0:1]            # (R, 1) -> lane broadcast
    a_next = coef_ref[:, 1:2]
    a_prev = coef_ref[:, 2:3]
    # Row r of x_next holds x[r+1]; row r of x_prev holds x[r-1].  The circular-wrap rows
    # (r = R-1 for x_next, r = 0 for x_prev) are neutralized by zero coefficients; this
    # relies on R = 2*N*C being even and on the exact row-parity layout of coef (asserted
    # in the wrapper).  Two sublane rolls + 3 broadcast FMAs keep XLU/VPU well below the
    # per-step DMA time even at ~2 MiB blocks, so the kernel stays HBM-bound.
    x_next = pltpu.roll(x, shift=R - 1, axis=0)
    x_prev = pltpu.roll(x, shift=1, axis=0)
    o_ref[...] = (a_self * x + a_next * x_next + a_prev * x_prev).astype(o_ref.dtype)


def _pick_lane_tile(T: int, rows: int, itemsize: int,
                    min_steps: int = 4, block_bytes_cap: int = 2 * 1024 * 1024) -> int:
    """Pick the lane-tile width tt (multiple of 128 unless T itself is tiny)."""
    if T <= 128:
        return T                                   # single block; lane dim == full array dim
    # (a) per-block byte budget
    cap_bytes_tt = max(128, (block_bytes_cap // (rows * itemsize)) // 128 * 128)
    # (b) keep >= min_steps grid steps when the length allows it (v7x megacore + pipelining)
    if T >= min_steps * 128:
        cap_steps_tt = max(128, (pl.cdiv(T, min_steps) // 128) * 128)
    else:
        cap_steps_tt = pl.cdiv(T, 128) * 128
    hi = max(128, min(cap_bytes_tt, cap_steps_tt, pl.cdiv(T, 128) * 128))
    # (c) among multiples of 128 up to hi, minimize padding waste; tie-break larger tt.
    best_tt, best_waste = 128, None
    tt = 128
    while tt <= hi:
        waste = pl.cdiv(T, tt) * tt - T
        if best_waste is None or waste < best_waste or (waste == best_waste and tt > best_tt):
            best_tt, best_waste = tt, waste
        tt += 128
    return best_tt


def _pair_mix(coef: jnp.ndarray, xd: jnp.ndarray, tt: int) -> jnp.ndarray:
    R, T_pad = xd.shape
    return pl.pallas_call(
        _pair_mix_kernel,
        out_shape=jax.ShapeDtypeStruct((R, T_pad), xd.dtype),
        grid_spec=pltpu.PrefetchScalarGridSpec(
            num_scalar_prefetch=0,
            grid=(T_pad // tt,),
            in_specs=[
                # Tiny lane-dense coefficient block: constant index_map -> fetched once.
                pl.BlockSpec((R, 3), lambda t: (0, 0)),
                # Lane-dense data tiles: all rows, `tt` output positions per grid step.
                pl.BlockSpec((R, tt), lambda t: (0, t)),
            ],
            out_specs=pl.BlockSpec((R, tt), lambda t: (0, t)),
        ),
        compiler_params=pltpu.CompilerParams(
            dimension_semantics=("parallel",),     # length axis is megacore-sharded on v7x
            vmem_limit_bytes=32 * 1024 * 1024),
    )(coef, xd)


# ----------------------------- forward wrapper -----------------------------

def invertible_downsampling_1d(x: jnp.ndarray, weight: jnp.ndarray, stride=2) -> jnp.ndarray:
    """Forward of InvertibleDownsampling1D.

    x      : (N, C, L)
    weight : (C, 2, 2) raw parametrization weight
    returns: (N, 2*C, L // 2)
    """
    if isinstance(stride, (tuple, list)):
        (stride,) = stride
    assert stride == 2, "haar/cayley InvertibleDownsampling1D uses stride 2"

    N, C, L = x.shape
    T = L // 2
    if L != 2 * T:                        # conv1d(stride=2, k=2) drops a ragged last sample
        x = x[:, :, : 2 * T]
    R = N * 2 * C
    assert R % 2 == 0                     # wrap rows of the in-kernel rolls rely on this
    # NOTE: for best DMA/vreg efficiency R should be a multiple of 8 (16 for bf16);
    # non-multiples still compile (block row dim equals the full array dim).

    K = cayley_kernel_matrix(weight)      # (C, 2, 2) orthogonal matrices, f32

    # --- per-output-row mixing coefficients (row r = n*2C + 2g + s), lane-dense (R, 3) ---
    zeros = jnp.zeros((C,), K.dtype)
    a_self = jnp.stack([K[:, 0, 0], K[:, 1, 1]], axis=1).reshape(-1)  # even r: K00; odd r: K11
    a_next = jnp.stack([K[:, 0, 1], zeros], axis=1).reshape(-1)       # even r: K01 (uses row r+1)
    a_prev = jnp.stack([zeros, K[:, 1, 0]], axis=1).reshape(-1)       # odd  r: K10 (uses row r-1)
    coef = jnp.tile(jnp.stack([a_self, a_next, a_prev], axis=1), (N, 1))   # (R, 3)

    # --- even/odd deinterleave: (N, C, T, 2) -> (N, C, 2, T) -> (R, T) ---
    # This is the single remaining XLA pass; see TODO(synk) at the top of the file.
    xd = jnp.transpose(x.reshape(N, C, T, 2), (0, 1, 3, 2)).reshape(R, T)

    tt = _pick_lane_tile(T, R, jnp.dtype(x.dtype).itemsize)
    T_pad = pl.cdiv(T, tt) * tt
    if T_pad != T:                        # only for ragged T; common case pads nothing
        xd = jnp.pad(xd, ((0, 0), (0, T_pad - T)))

    y = _pair_mix(coef, xd, tt)           # (R, T_pad), already in output row order
    if T_pad != T:
        y = y[:, :T]
    return y.reshape(N, 2 * C, T)


# ----------------------------- demo / check -----------------------------

if __name__ == "__main__":
    key = jax.random.PRNGKey(0)

    N, C, L = 2, 4, 1024                  # in_channels=4 -> out_channels=8, length 1024 -> 512
    x = jax.random.normal(key, (N, C, L), dtype=jnp.float32)
    weight = haar_cayley_weight_1d(C)     # (C, 2, 2) deterministic haar init

    out = jax.block_until_ready(invertible_downsampling_1d(x, weight, stride=2))
    T = L // 2
    assert out.shape == (N, 2 * C, T), out.shape

    # Independent NumPy reference: grouped conv1d (stride 2, kernel size 2) with the
    # cayley kernel computed via an explicit solve (different code path than the wrapper).
    W = np.asarray(weight, dtype=np.float64)
    A = W - np.swapaxes(W, -1, -2)
    I2 = np.eye(2, dtype=np.float64)
    K_np = np.linalg.solve(I2 + A, I2 - A)                      # (C, 2, 2)
    xv = np.asarray(x, dtype=np.float64).reshape(N, C, T, 2)
    ref = np.einsum('ngtk,gsk->ngst', xv, K_np).reshape(N, 2 * C, T)

    np.testing.assert_allclose(np.asarray(out), ref, rtol=1e-5, atol=1e-5)
    print("KERNEL_OK")
</pallas_src>

<mosaic_0001>
module attributes {stable_mosaic.version = 11 : i64} {
  func.func @_pair_mix_kernel(%arg0: i32, %arg1: memref<16x3xf32, #tpu.memory_space<vmem>>, %arg2: memref<16x128xf32, #tpu.memory_space<vmem>>, %arg3: memref<16x128xf32, #tpu.memory_space<vmem>>) attributes {dimension_semantics = [#tpu.dimension_semantics<parallel>], iteration_bounds = array<i64: 4>, scalar_prefetch = 0 : i64, scratch_operands = 0 : i64, tpu.core_type = #tpu.core_type<tc>, window_params = [{pipeline_mode = #tpu.pipeline_mode<synchronous>, transform_indices = @transform_0, window_bounds = array<i64: 16, 3>}, {transform_indices = @transform_1, window_bounds = array<i64: 16, 128>}, {transform_indices = @transform_2, window_bounds = array<i64: 16, 128>}]} {
    %c0 = arith.constant 0 : index
    %c0_0 = arith.constant 0 : index
    %0 = vector.load %arg2[%c0, %c0_0] : memref<16x128xf32, #tpu.memory_space<vmem>>, vector<16x128xf32>
    %c0_1 = arith.constant 0 : index
    %c0_2 = arith.constant 0 : index
    %1 = vector.load %arg1[%c0_1, %c0_2] : memref<16x3xf32, #tpu.memory_space<vmem>>, vector<16x1xf32>
    %c0_3 = arith.constant 0 : index
    %c1 = arith.constant 1 : index
    %2 = vector.load %arg1[%c0_3, %c1] : memref<16x3xf32, #tpu.memory_space<vmem>>, vector<16x1xf32>
    %c0_4 = arith.constant 0 : index
    %c2 = arith.constant 2 : index
    %3 = vector.load %arg1[%c0_4, %c2] : memref<16x3xf32, #tpu.memory_space<vmem>>, vector<16x1xf32>
    %c15_i32 = arith.constant 15 : i32
    %4 = tpu.dynamic_rotate %0 by %c15_i32 dim 0 : vector<16x128xf32>, i32 -> vector<16x128xf32>
    %c1_i32 = arith.constant 1 : i32
    %5 = tpu.dynamic_rotate %0 by %c1_i32 dim 0 : vector<16x128xf32>, i32 -> vector<16x128xf32>
    %6 = vector.broadcast %1 : vector<16x1xf32> to vector<16x128xf32>
    %7 = arith.mulf %6, %0 : vector<16x128xf32>
    %8 = vector.broadcast %2 : vector<16x1xf32> to vector<16x128xf32>
    %9 = arith.mulf %8, %4 : vector<16x128xf32>
    %10 = arith.addf %7, %9 : vector<16x128xf32>
    %11 = vector.broadcast %3 : vector<16x1xf32> to vector<16x128xf32>
    %12 = arith.mulf %11, %5 : vector<16x128xf32>
    %13 = arith.addf %10, %12 : vector<16x128xf32>
    %c0_5 = arith.constant 0 : index
    %c0_6 = arith.constant 0 : index
    %14 = vector.load %arg3[%c0_5, %c0_6] : memref<16x128xf32, #tpu.memory_space<vmem>>, vector<16x128xf32>
    tpu.vector_store %arg3[%c0_5, %c0_6], %13 {strides = array<i32>} : memref<16x128xf32, #tpu.memory_space<vmem>>, vector<16x128xf32>,
    return
  }
  func.func @transform_0(%arg0: i32) -> (i32, i32) {
    %c0_i32 = arith.constant 0 : i32
    %c0_i32_0 = arith.constant 0 : i32
    %c0_i32_1 = arith.constant 0 : i32
    return %c0_i32, %c0_i32_0 : i32, i32
  }
  func.func @transform_1(%arg0: i32) -> (i32, i32) {
    %c0_i32 = arith.constant 0 : i32
    %c0_i32_0 = arith.constant 0 : i32
    return %c0_i32, %arg0 : i32, i32
  }
  func.func @transform_2(%arg0: i32) -> (i32, i32) {
    %c0_i32 = arith.constant 0 : i32
    %c0_i32_0 = arith.constant 0 : i32
    return %c0_i32, %arg0 : i32, i32
  }
}

</mosaic_0001>

<llo_original>
// kernel: tpu_custom_call.1
$region0: #{tpu_custom_call.1}
  #allocation0 [shape = 'u32[]', space=smem, size = 0x4, offset = 0x4, fixed_abs, tag = 'smem constant byte address 0x4 - core index']
  #allocation1 [shape = 'u32[144,128]{1,0:T(1,128)}', space=vmem, size = 0x12000, scoped, tag = 'internal scratch']
  %s0 = inlined_call_operand.vmem [shape: f32[16,3], index: 0, kind: input, shape index: {}]
  %s1 = inlined_call_operand.hbm [shape: f32[16,512], index: 1, kind: input, shape index: {}]
  %s2 = inlined_call_operand.hbm [shape: f32[16,512], index: 2, kind: output, shape index: {}]
  %s3 = sld [smem:[#allocation0]]
  $region45: #{tpu_custom_call.1} parent=0
    _
  %s5 = ssub.s32 1, %s3
  %s6 = scalar_select 0, %s5, %s3
  $region1: #{tpu_custom_call.1} parent=0
    #allocation2 [shape = 'u8[16384]{0}', space=vmem, size = 0x4000, scoped, tag = 'input window, operand 1']
    #allocation3 [shape = 's32[2]{0}', space=sflag, size = 0x8, scoped, tag = 'scoped memory for tpu_custom_call.1']
    #allocation4 [shape = 's32[2]{0}', space=sflag, size = 0x8, scoped, tag = 'scoped memory for tpu_custom_call.1']
    #allocation5 [shape = 'u8[16384]{0}', space=vmem, size = 0x4000, scoped, tag = 'output window, operand 0']
    %7 = vsyncpa [#allocation3], 0
    %s8 = scalar_lea.sflag [#allocation3], 1
    %9 = vsyncpa %s8, 0
    %10 = vsyncpa [#allocation4], 0
    %s11 = scalar_lea.sflag [#allocation4], 1
    %12 = vsyncpa %s11, 0
    loop: start=0, step=1, limit=6
    $region2: #{tpu_custom_call.1} parent=1 // loop_pre_header
      _
    $region3: #{tpu_custom_call.1} parent=1 // loop_header
      %s14 = sphi 0, %s18
      %p15 = scmp.ge.s32.totalorder %s14, 6
      %s22 = sphi 0, %s22
      %s24 = sphi 0, %s22
      %s25 = sphi 0, %s24
      %s39 = sphi 0, %s25
      %s45 = sphi 0, %s47
      %s48 = sphi 0, %s45
      %s49 = sphi 0, %s48
      %s65 = sphi 0, %s49
      %s71 = sphi 0, %s73
      %s74 = sphi 0, %s71
      %s75 = sphi 0, %s74
      %s91 = sphi 0, %s75
    $region4: #{tpu_custom_call.1} parent=1 // loop_header_branch
      %17 = sbr.rel (%p15) target = $region8
    $region5: #{tpu_custom_call.1} parent=1 // loop_body
      %s19 = ssub.s32 %s14, 1
      %s20 = ssub.s32 %s14, 2
      %s21 = sadd.s32 %s14, 1
      %s23 = sadd.s32 %s22, 1
      %p26 = scmp.eq.s32.totalorder %s14, 3
      %p27 = scmp.ne.s32.totalorder %s22, %s24
      %p28 = scmp.eq.s32.totalorder %s14, 0
      %p29 = por %p27, %p28
      %p30 = scmp.ne.s32.totalorder %s22, %s24
      %p31 = scmp.eq.s32.totalorder %s19, 3
      %p32 = por %p30, %p31
      %p33 = scmp.ne.s32.totalorder %s24, %s25
      %p34 = scmp.eq.s32.totalorder %s19, 0
      %p35 = por %p33, %p34
      %p36 = scmp.ne.s32.totalorder %s24, %s25
      %p37 = scmp.eq.s32.totalorder %s20, 3
      %p38 = por %p36, %p37
      %p40 = scmp.ne.s32.totalorder %s25, %s39
      %p41 = scmp.eq.s32.totalorder %s20, 0
      %p42 = por %p40, %p41
      %s43 = ssub.s32 %s14, %s21
      %p44 = scmp.eq.s32.totalorder %s43, 0
      %s46 = sadd.s32 %s45, 1
      %s47 = scalar_select %p44, %s45, %s46
      %p50 = pneg %p44
      %p51 = scmp.eq.s32.totalorder %s14, 3
      %p52 = por %p50, %p51
      %p53 = scmp.ne.s32.totalorder %s45, %s48
      %p54 = scmp.eq.s32.totalorder %s14, 0
      %p55 = por %p53, %p54
      %p56 = scmp.ne.s32.totalorder %s45, %s48
      %p57 = scmp.eq.s32.totalorder %s19, 3
      %p58 = por %p56, %p57
      %p59 = scmp.ne.s32.totalorder %s48, %s49
      %p60 = scmp.eq.s32.totalorder %s19, 0
      %p61 = por %p59, %p60
      %p62 = scmp.ne.s32.totalorder %s48, %s49
      %p63 = scmp.eq.s32.totalorder %s20, 3
      %p64 = por %p62, %p63
      %p66 = scmp.ne.s32.totalorder %s49, %s65
      %p67 = scmp.eq.s32.totalorder %s20, 0
      %p68 = por %p66, %p67
      %s69 = ssub.s32 %s14, %s21
      %p70 = scmp.eq.s32.totalorder %s69, 0
      %s72 = sadd.s32 %s71, 1
      %s73 = scalar_select %p70, %s71, %s72
      %p76 = pneg %p70
      %p77 = scmp.eq.s32.totalorder %s14, 3
      %p78 = por %p76, %p77
      %p79 = scmp.ne.s32.totalorder %s71, %s74
      %p80 = scmp.eq.s32.totalorder %s14, 0
      %p81 = por %p79, %p80
      %p82 = scmp.ne.s32.totalorder %s71, %s74
      %p83 = scmp.eq.s32.totalorder %s19, 3
      %p84 = por %p82, %p83
      %p85 = scmp.ne.s32.totalorder %s74, %s75
      %p86 = scmp.eq.s32.totalorder %s19, 0
      %p87 = por %p85, %p86
      %p88 = scmp.ne.s32.totalorder %s74, %s75
      %p89 = scmp.eq.s32.totalorder %s20, 3
      %p90 = por %p88, %p89
      %p92 = scmp.ne.s32.totalorder %s75, %s91
      %p93 = scmp.eq.s32.totalorder %s20, 0
      %p94 = por %p92, %p93
      %p95 = scmp.le.s32.totalorder 1, %s14
      %p96 = scmp.lt.s32.totalorder %s14, 5
      %p97 = pnand %p95, %p96
      %p98 = pneg %p97
      // Predicated region
      $region9: #{tpu_custom_call.1} parent=5 // pred_check
        _
      $region10: #{tpu_custom_call.1} parent=5 // pred_check_branch
        %100 = sbr.rel (%p97) target = $region12
      $region11: #{tpu_custom_call.1} parent=5 // pred_region
        %s101 = ssub.s32 %s14, 1
        // Predicated region
        $region13: #{tpu_custom_call.1} parent=11 // pred_check
          %p102 = pneg %p35
        $region14: #{tpu_custom_call.1} parent=11 // pred_check_branch
          %104 = sbr.rel (%p102) target = $region16
        $region15: #{tpu_custom_call.1} parent=11 // pred_region
          _
        $region16: #{tpu_custom_call.1} parent=11 // pred_fallthru
          _
      $region12: #{tpu_custom_call.1} parent=5 // pred_fallthru
        _
      %p105 = scmp.lt.s32.totalorder %s14, 4
      // Predicated region
      $region17: #{tpu_custom_call.1} parent=5 // pred_check
        %p106 = pneg %p105
      $region18: #{tpu_custom_call.1} parent=5 // pred_check_branch
        %108 = sbr.rel (%p106) target = $region20
      $region19: #{tpu_custom_call.1} parent=5 // pred_region
        // Predicated region
        $region21: #{tpu_custom_call.1} parent=19 // pred_check
          %p109 = pneg %p55
        $region22: #{tpu_custom_call.1} parent=19 // pred_check_branch
          %111 = sbr.rel (%p109) target = $region24
        $region23: #{tpu_custom_call.1} parent=19 // pred_region
          %s112 = sand.u32 %s45, 1
          %s113 = scalar_lea.sflag [#allocation3], %s112
          %s114 = sand.u32 %s45, 1
          %s115 = smul.addr %s114, 16
          %s116 = scalar_lea.vmem [#allocation2], %s115
          %s118 = ssub.s32 256, 256
          %119 = vsyncadd %s113, %s118
          %s120 = smul.addr %s14, 128
          %s121 = scalar_lea.hbm %s1, %s120
          %s122 = sshll.u32 %s116, 4
          %s123 = int_to_ptr.vmem [resolvable:$true] %s122
          %128 = dma.hbm_to_vmem [thread:$0]  %s121, 256, %s123, %s113, 512, 128, 8
        $region24: #{tpu_custom_call.1} parent=19 // pred_fallthru
          _
      $region20: #{tpu_custom_call.1} parent=5 // pred_fallthru
        _
      %p129 = scmp.le.s32.totalorder 1, %s14
      %p130 = scmp.lt.s32.totalorder %s14, 5
      %p131 = pnand %p129, %p130
      %p132 = pneg %p131
      // Predicated region
      $region25: #{tpu_custom_call.1} parent=5 // pred_check
        _
      $region26: #{tpu_custom_call.1} parent=5 // pred_check_branch
        %134 = sbr.rel (%p131) target = $region28
      $region27: #{tpu_custom_call.1} parent=5 // pred_region
        %s135 = ssub.s32 %s14, 1
        %s136 = sand.u32 %s48, 1
        %s137 = scalar_lea.sflag [#allocation3], %s136
        %s138 = sand.u32 %s48, 1
        %s139 = smul.addr %s138, 16
        %s140 = scalar_lea.vmem [#allocation2], %s139
        // Predicated region
        $region29: #{tpu_custom_call.1} parent=27 // pred_check
          %p141 = pneg %p61
        $region30: #{tpu_custom_call.1} parent=27 // pred_check_branch
          %143 = sbr.rel (%p141) target = $region32
        $region31: #{tpu_custom_call.1} parent=27 // pred_region
          %144 = dma.done %s137, 256
        $region32: #{tpu_custom_call.1} parent=27 // pred_fallthru
          _
        %p145 = pneg %p35
        %p146 = pneg %p32
        %s147 = sand.u32 %s48, 1
        %s148 = scalar_lea.sflag [#allocation3], %s147
        %s149 = sand.u32 %s48, 1
        %s150 = smul.addr %s149, 16
        %s151 = scalar_lea.vmem [#allocation2], %s150
        %p152 = pneg %p61
        %p153 = pneg %p58
        %p154 = pneg %p87
        %p155 = pneg %p84
        %s156 = sand.u32 %s74, 1
        %s157 = scalar_lea.sflag [#allocation4], %s156
        %s158 = sand.u32 %s74, 1
        %s159 = smul.addr %s158, 16
        %s160 = scalar_lea.vmem [#allocation5], %s159
        %v161 = vld [vmem:[%s140] sm:$0xff]
        %v162 = vld [vmem:[%s140 + $0x8] sm:$0xff]
        %v163 = vld [vmem:[%s0] sm:$0xff]
        %v164 = vld [vmem:[%s0 + $0x8] sm:$0xff]
        %v165 = vrot.slane %v161, 1
        %v166 = vrot.slane %v162, 1
        %v167 = vlaneseq
        %v168 = vshrl.u32 %v167, 7
        %vm169 = vcmp.lt.s32.totalorder %v168, 7
        %v170 = vsel %vm169, %v165, %v166
        %v171 = vsel %vm169, %v166, %v165
        %v172 = vrot.slane %v161, 7
        %v173 = vrot.slane %v162, 7
        %vm174 = vcmp.lt.s32.totalorder %v168, 1
        %v175 = vsel %vm174, %v172, %v173
        %v176 = vsel %vm174, %v173, %v172
        %178 = vset.pattern.permute.xlu0 0
        %179 = vperm.xlu0 %178, %v163
        %v180 = vpop.permute.xlu0 %179
        %183 = vset.pattern.permute.xlu0 0
        %184 = vperm.xlu0 %183, %v164
        %v185 = vpop.permute.xlu0 %184
        %v187 = vmul.f32 %v180, %v161
        %v188 = vmul.f32 %v185, %v162
        %189 = vset.pattern.permute.xlu0 1
        %190 = vperm.xlu0 %189, %v163
        %v191 = vpop.permute.xlu0 %190
        %193 = vset.pattern.permute.xlu0 1
        %194 = vperm.xlu0 %193, %v164
        %v195 = vpop.permute.xlu0 %194
        %v197 = vmul.f32 %v191, %v170
        %v198 = vmul.f32 %v195, %v171
        %v199 = vadd.f32 %v187, %v197
        %v200 = vadd.f32 %v188, %v198
        %201 = vset.pattern.permute.xlu0 2
        %202 = vperm.xlu0 %201, %v163
        %v203 = vpop.permute.xlu0 %202
        %205 = vset.pattern.permute.xlu0 2
        %206 = vperm.xlu0 %205, %v164
        %v207 = vpop.permute.xlu0 %206
        %v209 = vmul.f32 %v203, %v176
        %v210 = vmul.f32 %v207, %v175
        %v211 = vadd.f32 %v199, %v209
        %v212 = vadd.f32 %v200, %v210
        %213 = vst [vmem:[%s160] sm:$0xff] %v211
        %214 = vst [vmem:[%s160 + $0x8] sm:$0xff] %v212
        %s215 = sand.u32 %s74, 1
        %s216 = scalar_lea.sflag [#allocation4], %s215
        %s217 = sand.u32 %s74, 1
        %s218 = smul.addr %s217, 16
        %s219 = scalar_lea.vmem [#allocation5], %s218
        // Predicated region
        $region33: #{tpu_custom_call.1} parent=27 // pred_check
          %p220 = pneg %p84
        $region34: #{tpu_custom_call.1} parent=27 // pred_check_branch
          %222 = sbr.rel (%p220) target = $region36
        $region35: #{tpu_custom_call.1} parent=27 // pred_region
          %s224 = ssub.s32 256, 256
          %225 = vsyncadd %s216, %s224
          %s226 = smul.addr %s19, 128
          %s227 = scalar_lea.hbm %s2, %s226
          %s228 = sshll.u32 %s219, 4
          %s229 = int_to_ptr.vmem [resolvable:$true] %s228
          %234 = dma.vmem_to_hbm [thread:$0]  %s229, 256, %s227, %s216, 128, 512, 8
        $region36: #{tpu_custom_call.1} parent=27 // pred_fallthru
          _
      $region28: #{tpu_custom_call.1} parent=5 // pred_fallthru
        _
      %p235 = scmp.le.s32.totalorder 2, %s14
      // Predicated region
      $region37: #{tpu_custom_call.1} parent=5 // pred_check
        %p236 = pneg %p235
      $region38: #{tpu_custom_call.1} parent=5 // pred_check_branch
        %238 = sbr.rel (%p236) target = $region40
      $region39: #{tpu_custom_call.1} parent=5 // pred_region
        %s239 = ssub.s32 %s14, 2
        // Predicated region
        $region41: #{tpu_custom_call.1} parent=39 // pred_check
          %p240 = pneg %p90
        $region42: #{tpu_custom_call.1} parent=39 // pred_check_branch
          %242 = sbr.rel (%p240) target = $region44
        $region43: #{tpu_custom_call.1} parent=39 // pred_region
          %s243 = sand.u32 %s75, 1
          %s244 = scalar_lea.sflag [#allocation4], %s243
          %s245 = sand.u32 %s75, 1
          %s246 = smul.addr %s245, 16
          %s247 = scalar_lea.vmem [#allocation5], %s246
          %248 = dma.done %s244, 256
        $region44: #{tpu_custom_call.1} parent=39 // pred_fallthru
          _
      $region40: #{tpu_custom_call.1} parent=5 // pred_fallthru
        _
    $region6: #{tpu_custom_call.1} parent=1 // loop_footer
      %s18 = sadd.s32 1, %s14
    $region7: #{tpu_custom_call.1} parent=1 // loop_footer_branch
      %13 = sbr.rel target = $region3
    $region8: #{tpu_custom_call.1} parent=1 // loop_exit
      _
    %249 = vsyncpa [#allocation3], 1
    %s250 = scalar_lea.sflag [#allocation3], 1
    %251 = vsyncpa %s250, 1
    %252 = vsyncpa [#allocation4], 1
    %s253 = scalar_lea.sflag [#allocation4], 1
    %254 = vsyncpa %s253, 1

</llo_original>
